<compile_context>
chip_gen: v7x
topology: tpu7x:2x2x1
jax: 0.10.0
libtpu: 0.0.40
codegen_flags: <defaults>
</compile_context>

<pallas_src>
import functools

import jax
import jax.numpy as jnp
from jax.experimental import pallas as pl
from jax.experimental.pallas import tpu as pltpu

KERNEL_SIZE = 5  # must be odd (as in the PyTorch usage)


def _cdiv(a, b):
    return -(-a // b)


def _round_up(n, m):
    return ((n + m - 1) // m) * m


def _make_decomp_kernel(L, kernel_size):
    """Kernel over a (bb, L, cb) tile; time (L) sits on the sublane axis."""
    pad = (kernel_size - 1) // 2
    inv_k = 1.0 / float(kernel_size)

    def kernel(x_ref, res_ref, mean_ref, xp_ref):
        x = x_ref[...].astype(jnp.float32)                 # (bb, L, cb)
        bb, _, cb = x.shape

        if pad == 0:
            mean = x
        else:
            # Replicate-padded series, built once in VMEM scratch:
            #   xp[:, 0:pad]           = x[:, 0]
            #   xp[:, pad:pad+L]       = x
            #   xp[:, pad+L:pad+L+pad] = x[:, L-1]
            xp_ref[:, pl.ds(pad, L), :] = x
            xp_ref[:, pl.ds(0, pad), :] = jnp.broadcast_to(
                x[:, 0:1, :], (bb, pad, cb))
            xp_ref[:, pl.ds(pad + L, pad), :] = jnp.broadcast_to(
                x[:, L - 1:L, :], (bb, pad, cb))
            # K-tap sliding sum: centre tap is x itself (already in registers);
            # the other K-1 taps are statically shifted reads of the scratch.
            acc = x
            for k in range(kernel_size):
                if k == pad:
                    continue
                acc = acc + xp_ref[:, pl.ds(k, L), :]
            mean = acc * inv_k

        mean_ref[...] = mean.astype(mean_ref.dtype)
        res_ref[...] = (x - mean).astype(res_ref.dtype)

    return kernel


def _choose_blocks(B, L, C, itemsize, target_bytes=2 * 1024 * 1024):
    """Pick (batch_block, channel_block).

    Channel (lane) block is the full C when C <= 512 (legal: equals the array
    dim) else 512 (a multiple of 128; the ragged tail block is masked).  The
    batch block targets ~target_bytes of input per block (sized with the
    physically padded (8,128) footprint) and prefers an even total grid-step
    count so both v7x TensorCores get balanced work.
    """
    cb = C if C <= 512 else 512
    lane_p = _round_up(cb, 128)
    sub_p = _round_up(max(L, 1), 8)
    per_batch = max(1, sub_p * lane_p * itemsize)
    bb = max(1, min(B, target_bytes // per_batch))
    n_c = _cdiv(C, cb)
    n_b = _cdiv(B, bb)
    if (n_b * n_c) % 2 == 1:
        if n_b == 1 and B >= 2:
            bb = _cdiv(B, 2)
        elif n_b > 1:
            cand = _cdiv(B, n_b + 1)
            if cand >= 1 and 2 * cand * per_batch >= target_bytes:
                bb = cand
    return bb, cb


@functools.partial(jax.jit, static_argnames=("kernel_size",))
def series_decomp(x, kernel_size=KERNEL_SIZE):
    """x: (B, L, C) float array. Returns (res, moving_mean), both (B, L, C)."""
    if kernel_size % 2 != 1:
        raise ValueError("kernel_size must be odd for res = x - moving_mean")
    B, L, C = x.shape
    pad = (kernel_size - 1) // 2
    itemsize = jnp.dtype(x.dtype).itemsize

    bb, cb = _choose_blocks(B, L, C, itemsize)
    n_b, n_c = _cdiv(B, bb), _cdiv(C, cb)
    # NOTE: the whole time axis lives in one block, so no halo is needed.
    # TODO(synk): for extremely long L that would not fit VMEM, tile L with a
    # 2*pad halo instead of taking the full time axis per block.

    # VMEM budget computed from the physically padded block footprint:
    # 3 streams (1 in + 2 out) double-buffered, the padded-series scratch and
    # a few f32 temporaries, plus headroom; clamped to v7x's 64 MiB physical.
    lane_p = _round_up(cb, 128)
    sub_p = _round_up(L, 8)
    blk_in = bb * sub_p * lane_p * itemsize
    blk_f32 = bb * sub_p * lane_p * 4
    scratch_bytes = bb * _round_up(L + 2 * pad, 8) * lane_p * 4
    vmem_needed = 2 * 3 * blk_in + scratch_bytes + 4 * blk_f32 + (4 << 20)
    vmem_limit = int(min(max(vmem_needed, 32 << 20), 64 << 20))

    spec = pl.BlockSpec((bb, L, cb), lambda i, j: (i, 0, j))
    res, mean = pl.pallas_call(
        _make_decomp_kernel(L, kernel_size),
        out_shape=(
            jax.ShapeDtypeStruct((B, L, C), x.dtype),   # res
            jax.ShapeDtypeStruct((B, L, C), x.dtype),   # moving_mean
        ),
        grid_spec=pltpu.PrefetchScalarGridSpec(
            num_scalar_prefetch=0,
            grid=(n_b, n_c),
            in_specs=[spec],
            out_specs=(spec, spec),
            scratch_shapes=[pltpu.VMEM((bb, L + 2 * pad, cb), jnp.float32)],
        ),
        compiler_params=pltpu.CompilerParams(
            dimension_semantics=("parallel", "parallel"),
            vmem_limit_bytes=vmem_limit,
        ),
    )(x)
    return res, mean


def _reference(x, kernel_size=KERNEL_SIZE):
    pad = (kernel_size - 1) // 2
    front = jnp.repeat(x[:, 0:1, :], pad, axis=1)
    end = jnp.repeat(x[:, -1:, :], pad, axis=1)
    padded = jnp.concatenate([front, x, end], axis=1)
    L = x.shape[1]
    mean = sum(padded[:, k:k + L, :] for k in range(kernel_size)) / kernel_size
    return x - mean, mean


if __name__ == "__main__":
    key = jax.random.PRNGKey(0)

    # Primary shape: (batch, seq_len, channels) as the module's forward implies.
    B, L, C = 2, 16, 8
    x = jax.random.normal(key, (B, L, C), dtype=jnp.float32)
    res, mean = series_decomp(x, kernel_size=KERNEL_SIZE)
    res = jax.block_until_ready(res)
    mean = jax.block_until_ready(mean)
    ref_res, ref_mean = _reference(x, KERNEL_SIZE)
    assert jnp.allclose(mean, ref_mean, atol=1e-5, rtol=1e-5)
    assert jnp.allclose(res, ref_res, atol=1e-5, rtol=1e-5)

    # Ragged-grid check (batch count not divisible by the batch block).
    x2 = jax.random.normal(jax.random.PRNGKey(1), (3, 24, 5), dtype=jnp.float32)
    res2, mean2 = series_decomp(x2, kernel_size=KERNEL_SIZE)
    res2 = jax.block_until_ready(res2)
    ref_res2, ref_mean2 = _reference(x2, KERNEL_SIZE)
    assert jnp.allclose(mean2, ref_mean2, atol=1e-5, rtol=1e-5)
    assert jnp.allclose(res2, ref_res2, atol=1e-5, rtol=1e-5)

    print("KERNEL_OK")
</pallas_src>

<mosaic_0001>
module attributes {stable_mosaic.version = 11 : i64} {
  func.func @kernel(%arg0: i32, %arg1: i32, %arg2: memref<1x16x8xf32, #tpu.memory_space<vmem>>, %arg3: memref<1x16x8xf32, #tpu.memory_space<vmem>>, %arg4: memref<1x16x8xf32, #tpu.memory_space<vmem>>, %arg5: memref<1x20x8xf32, #tpu.memory_space<vmem>>) attributes {dimension_semantics = [#tpu.dimension_semantics<parallel>, #tpu.dimension_semantics<parallel>], iteration_bounds = array<i64: 2, 1>, scalar_prefetch = 0 : i64, scratch_operands = 1 : i64, tpu.core_type = #tpu.core_type<tc>, window_params = [{transform_indices = @transform_0, window_bounds = array<i64: 1, 16, 8>}, {transform_indices = @transform_1, window_bounds = array<i64: 1, 16, 8>}, {transform_indices = @transform_2, window_bounds = array<i64: 1, 16, 8>}]} {
    %c0 = arith.constant 0 : index
    %c0_0 = arith.constant 0 : index
    %c0_1 = arith.constant 0 : index
    %0 = vector.load %arg2[%c0, %c0_0, %c0_1] : memref<1x16x8xf32, #tpu.memory_space<vmem>>, vector<1x16x8xf32>
    %c0_2 = arith.constant 0 : index
    %c2 = arith.constant 2 : index
    %c0_3 = arith.constant 0 : index
    %1 = vector.load %arg5[%c0_2, %c2, %c0_3] : memref<1x20x8xf32, #tpu.memory_space<vmem>>, vector<1x16x8xf32>
    tpu.vector_store %arg5[%c0_2, %c2, %c0_3], %0 {strides = array<i32>} : memref<1x20x8xf32, #tpu.memory_space<vmem>>, vector<1x16x8xf32>,
    %2 = vector.extract_strided_slice %0 {offsets = [0, 0, 0], sizes = [1, 1, 8], strides = [1, 1, 1]} : vector<1x16x8xf32> to vector<1x1x8xf32>
    %3 = vector.shape_cast %2 : vector<1x1x8xf32> to vector<1x1x8xf32>
    %4 = vector.broadcast %3 : vector<1x1x8xf32> to vector<1x2x8xf32>
    %c0_4 = arith.constant 0 : index
    %c0_5 = arith.constant 0 : index
    %c0_6 = arith.constant 0 : index
    %5 = vector.load %arg5[%c0_4, %c0_5, %c0_6] : memref<1x20x8xf32, #tpu.memory_space<vmem>>, vector<1x2x8xf32>
    tpu.vector_store %arg5[%c0_4, %c0_5, %c0_6], %4 {strides = array<i32>} : memref<1x20x8xf32, #tpu.memory_space<vmem>>, vector<1x2x8xf32>,
    %6 = vector.extract_strided_slice %0 {offsets = [0, 15, 0], sizes = [1, 1, 8], strides = [1, 1, 1]} : vector<1x16x8xf32> to vector<1x1x8xf32>
    %7 = vector.shape_cast %6 : vector<1x1x8xf32> to vector<1x1x8xf32>
    %8 = vector.broadcast %7 : vector<1x1x8xf32> to vector<1x2x8xf32>
    %c0_7 = arith.constant 0 : index
    %c18 = arith.constant 18 : index
    %c0_8 = arith.constant 0 : index
    %9 = vector.load %arg5[%c0_7, %c18, %c0_8] : memref<1x20x8xf32, #tpu.memory_space<vmem>>, vector<1x2x8xf32>
    tpu.vector_store %arg5[%c0_7, %c18, %c0_8], %8 {strides = array<i32>} : memref<1x20x8xf32, #tpu.memory_space<vmem>>, vector<1x2x8xf32>,
    %c0_9 = arith.constant 0 : index
    %c0_10 = arith.constant 0 : index
    %c0_11 = arith.constant 0 : index
    %10 = vector.load %arg5[%c0_9, %c0_10, %c0_11] : memref<1x20x8xf32, #tpu.memory_space<vmem>>, vector<1x16x8xf32>
    %11 = arith.addf %0, %10 : vector<1x16x8xf32>
    %c0_12 = arith.constant 0 : index
    %c1 = arith.constant 1 : index
    %c0_13 = arith.constant 0 : index
    %12 = vector.load %arg5[%c0_12, %c1, %c0_13] : memref<1x20x8xf32, #tpu.memory_space<vmem>>, vector<1x16x8xf32>
    %13 = arith.addf %11, %12 : vector<1x16x8xf32>
    %c0_14 = arith.constant 0 : index
    %c3 = arith.constant 3 : index
    %c0_15 = arith.constant 0 : index
    %14 = vector.load %arg5[%c0_14, %c3, %c0_15] : memref<1x20x8xf32, #tpu.memory_space<vmem>>, vector<1x16x8xf32>
    %15 = arith.addf %13, %14 : vector<1x16x8xf32>
    %c0_16 = arith.constant 0 : index
    %c4 = arith.constant 4 : index
    %c0_17 = arith.constant 0 : index
    %16 = vector.load %arg5[%c0_16, %c4, %c0_17] : memref<1x20x8xf32, #tpu.memory_space<vmem>>, vector<1x16x8xf32>
    %17 = arith.addf %15, %16 : vector<1x16x8xf32>
    %cst = arith.constant 2.000000e-01 : f32
    %18 = vector.broadcast %cst : f32 to vector<1x16x8xf32>
    %19 = arith.mulf %17, %18 : vector<1x16x8xf32>
    %c0_18 = arith.constant 0 : index
    %c0_19 = arith.constant 0 : index
    %c0_20 = arith.constant 0 : index
    %20 = vector.load %arg4[%c0_18, %c0_19, %c0_20] : memref<1x16x8xf32, #tpu.memory_space<vmem>>, vector<1x16x8xf32>
    tpu.vector_store %arg4[%c0_18, %c0_19, %c0_20], %19 {strides = array<i32>} : memref<1x16x8xf32, #tpu.memory_space<vmem>>, vector<1x16x8xf32>,
    %21 = arith.subf %0, %19 : vector<1x16x8xf32>
    %c0_21 = arith.constant 0 : index
    %c0_22 = arith.constant 0 : index
    %c0_23 = arith.constant 0 : index
    %22 = vector.load %arg3[%c0_21, %c0_22, %c0_23] : memref<1x16x8xf32, #tpu.memory_space<vmem>>, vector<1x16x8xf32>
    tpu.vector_store %arg3[%c0_21, %c0_22, %c0_23], %21 {strides = array<i32>} : memref<1x16x8xf32, #tpu.memory_space<vmem>>, vector<1x16x8xf32>,
    return
  }
  func.func @transform_0(%arg0: i32, %arg1: i32) -> (i32, i32, i32) {
    %c0_i32 = arith.constant 0 : i32
    %c0_i32_0 = arith.constant 0 : i32
    return %arg0, %c0_i32, %arg1 : i32, i32, i32
  }
  func.func @transform_1(%arg0: i32, %arg1: i32) -> (i32, i32, i32) {
    %c0_i32 = arith.constant 0 : i32
    %c0_i32_0 = arith.constant 0 : i32
    return %arg0, %c0_i32, %arg1 : i32, i32, i32
  }
  func.func @transform_2(%arg0: i32, %arg1: i32) -> (i32, i32, i32) {
    %c0_i32 = arith.constant 0 : i32
    %c0_i32_0 = arith.constant 0 : i32
    return %arg0, %c0_i32, %arg1 : i32, i32, i32
  }
}

</mosaic_0001>

<llo_original>
// kernel: series_decomp.1
$region0: #{series_decomp.1}
  #allocation0 [shape = 'u32[]', space=smem, size = 0x4, offset = 0x4, fixed_abs, tag = 'smem constant byte address 0x4 - core index']
  #allocation1 [shape = 'u32[144,128]{1,0:T(1,128)}', space=vmem, size = 0x12000, scoped, tag = 'internal scratch']
  #allocation2 [shape = 'f32[1,20,8]{2,1,0:T(8,128)}', space=vmem, size = 0x3000, scoped, tag = 'scratch operand']
  %s0 = inlined_call_operand.vmem [shape: f32[2,16,8], index: 0, kind: input, shape index: {}]
  %s1 = inlined_call_operand.vmem [shape: f32[2,16,8], index: 1, kind: output, shape index: {0}]
  %s2 = inlined_call_operand.vmem [shape: f32[2,16,8], index: 2, kind: output, shape index: {1}]
  %3 = xla_tuple %s1, %s2
  %s4 = sld [smem:[#allocation0]]
  $region45: #{series_decomp.1} parent=0
    _
  %s6 = ssub.s32 1, %s4
  %s7 = scalar_select 0, %s6, %s4
  loop: start=0, step=1, limit=4
  $region2: #{series_decomp.1} parent=0 // loop_pre_header
    _
  $region3: #{series_decomp.1} parent=0 // loop_header
    %s9 = sphi 0, %s13
    %p10 = scmp.ge.s32.totalorder %s9, 4
    %s16 = sphi 0, %s28
    %s17 = sphi 0, %s24
    %s18 = sphi 0, %s16
    %s19 = sphi 0, %s17
    %s20 = sphi 0, %s18
    %s21 = sphi 0, %s19
    %s33 = sphi 0, %s35
    %s36 = sphi 0, %s33
    %s37 = sphi 0, %s36
    %s53 = sphi 0, %s37
    %s61 = sphi 0, %s63
    %s64 = sphi 0, %s61
    %s65 = sphi 0, %s64
    %s81 = sphi 0, %s65
    %s89 = sphi 0, %s91
    %s92 = sphi 0, %s89
    %s93 = sphi 0, %s92
    %s109 = sphi 0, %s93
  $region4: #{series_decomp.1} parent=0 // loop_header_branch
    %12 = sbr.rel (%p10) target = $region8
  $region5: #{series_decomp.1} parent=0 // loop_body
    %s14 = ssub.s32 %s9, 1
    %s15 = ssub.s32 %s9, 2
    %s22 = sadd.s32 1, %s17
    %p23 = scmp.ge.s32.totalorder %s22, 1
    %s24 = scalar_select %p23, 0, %s22
    %s25 = sadd.s32 1, %s16
    %s26 = scalar_select %p23, %s25, %s16
    %p27 = scmp.ge.s32.totalorder %s26, 2
    %s28 = scalar_select %p27, 0, %s26
    %s29 = ssub.s32 %s16, %s28
    %s30 = ssub.s32 %s17, %s24
    %s31 = sor.u32 %s29, %s30
    %p32 = scmp.eq.s32.totalorder %s31, 0
    %s34 = sadd.s32 %s33, 1
    %s35 = scalar_select %p32, %s33, %s34
    %p38 = pneg %p32
    %p39 = scmp.eq.s32.totalorder %s9, 1
    %p40 = por %p38, %p39
    %p41 = scmp.ne.s32.totalorder %s33, %s36
    %p42 = scmp.eq.s32.totalorder %s9, 0
    %p43 = por %p41, %p42
    %p44 = scmp.ne.s32.totalorder %s33, %s36
    %p45 = scmp.eq.s32.totalorder %s14, 1
    %p46 = por %p44, %p45
    %p47 = scmp.ne.s32.totalorder %s36, %s37
    %p48 = scmp.eq.s32.totalorder %s14, 0
    %p49 = por %p47, %p48
    %p50 = scmp.ne.s32.totalorder %s36, %s37
    %p51 = scmp.eq.s32.totalorder %s15, 1
    %p52 = por %p50, %p51
    %p54 = scmp.ne.s32.totalorder %s37, %s53
    %p55 = scmp.eq.s32.totalorder %s15, 0
    %p56 = por %p54, %p55
    %s57 = ssub.s32 %s16, %s28
    %s58 = ssub.s32 %s17, %s24
    %s59 = sor.u32 %s57, %s58
    %p60 = scmp.eq.s32.totalorder %s59, 0
    %s62 = sadd.s32 %s61, 1
    %s63 = scalar_select %p60, %s61, %s62
    %p66 = pneg %p60
    %p67 = scmp.eq.s32.totalorder %s9, 1
    %p68 = por %p66, %p67
    %p69 = scmp.ne.s32.totalorder %s61, %s64
    %p70 = scmp.eq.s32.totalorder %s9, 0
    %p71 = por %p69, %p70
    %p72 = scmp.ne.s32.totalorder %s61, %s64
    %p73 = scmp.eq.s32.totalorder %s14, 1
    %p74 = por %p72, %p73
    %p75 = scmp.ne.s32.totalorder %s64, %s65
    %p76 = scmp.eq.s32.totalorder %s14, 0
    %p77 = por %p75, %p76
    %p78 = scmp.ne.s32.totalorder %s64, %s65
    %p79 = scmp.eq.s32.totalorder %s15, 1
    %p80 = por %p78, %p79
    %p82 = scmp.ne.s32.totalorder %s65, %s81
    %p83 = scmp.eq.s32.totalorder %s15, 0
    %p84 = por %p82, %p83
    %s85 = ssub.s32 %s16, %s28
    %s86 = ssub.s32 %s17, %s24
    %s87 = sor.u32 %s85, %s86
    %p88 = scmp.eq.s32.totalorder %s87, 0
    %s90 = sadd.s32 %s89, 1
    %s91 = scalar_select %p88, %s89, %s90
    %p94 = pneg %p88
    %p95 = scmp.eq.s32.totalorder %s9, 1
    %p96 = por %p94, %p95
    %p97 = scmp.ne.s32.totalorder %s89, %s92
    %p98 = scmp.eq.s32.totalorder %s9, 0
    %p99 = por %p97, %p98
    %p100 = scmp.ne.s32.totalorder %s89, %s92
    %p101 = scmp.eq.s32.totalorder %s14, 1
    %p102 = por %p100, %p101
    %p103 = scmp.ne.s32.totalorder %s92, %s93
    %p104 = scmp.eq.s32.totalorder %s14, 0
    %p105 = por %p103, %p104
    %p106 = scmp.ne.s32.totalorder %s92, %s93
    %p107 = scmp.eq.s32.totalorder %s15, 1
    %p108 = por %p106, %p107
    %p110 = scmp.ne.s32.totalorder %s93, %s109
    %p111 = scmp.eq.s32.totalorder %s15, 0
    %p112 = por %p110, %p111
    %p113 = scmp.le.s32.totalorder 1, %s9
    %p114 = scmp.lt.s32.totalorder %s9, 3
    %p115 = pnand %p113, %p114
    %p116 = pneg %p115
    // Predicated region
    $region9: #{series_decomp.1} parent=5 // pred_check
      _
    $region10: #{series_decomp.1} parent=5 // pred_check_branch
      %118 = sbr.rel (%p115) target = $region12
    $region11: #{series_decomp.1} parent=5 // pred_region
      %s119 = ssub.s32 %s9, 1
    $region12: #{series_decomp.1} parent=5 // pred_fallthru
      _
    %p120 = scmp.lt.s32.totalorder %s9, 2
    // Predicated region
    $region13: #{series_decomp.1} parent=5 // pred_check
      %p121 = pneg %p120
    $region14: #{series_decomp.1} parent=5 // pred_check_branch
      %123 = sbr.rel (%p121) target = $region16
    $region15: #{series_decomp.1} parent=5 // pred_region
      // Predicated region
      $region17: #{series_decomp.1} parent=15 // pred_check
        %p124 = pneg %p43
      $region18: #{series_decomp.1} parent=15 // pred_check_branch
        %126 = sbr.rel (%p124) target = $region20
      $region19: #{series_decomp.1} parent=15 // pred_region
        %p127 = scmp.lt.s32.totalorder %s16, 1
        %s128 = scalar_select %p127, %s16, 1
        %p129 = scmp.lt.s32.totalorder %s17, 0
        %s130 = scalar_select %p129, %s17, 0
        %s131 = smul.addr %s128, 2
        %s132 = sadd.s32 %s130, %s131
        %s133 = smul.addr %s132, 8
        %s134 = scalar_lea.vmem %s0, %s133
      $region20: #{series_decomp.1} parent=15 // pred_fallthru
        _
    $region16: #{series_decomp.1} parent=5 // pred_fallthru
      _
    %p135 = scmp.le.s32.totalorder 1, %s9
    %p136 = scmp.lt.s32.totalorder %s9, 3
    %p137 = pnand %p135, %p136
    %p138 = pneg %p137
    // Predicated region
    $region21: #{series_decomp.1} parent=5 // pred_check
      _
    $region22: #{series_decomp.1} parent=5 // pred_check_branch
      %140 = sbr.rel (%p137) target = $region24
    $region23: #{series_decomp.1} parent=5 // pred_region
      %s141 = ssub.s32 %s9, 1
      %p142 = scmp.lt.s32.totalorder %s18, 1
      %s143 = scalar_select %p142, %s18, 1
      %p144 = scmp.lt.s32.totalorder %s19, 0
      %s145 = scalar_select %p144, %s19, 0
      %s146 = smul.addr %s143, 2
      %s147 = sadd.s32 %s145, %s146
      %s148 = smul.addr %s147, 8
      %s149 = scalar_lea.vmem %s0, %s148
      %p150 = pneg %p49
      %p151 = pneg %p46
      %p152 = pneg %p77
      %p153 = pneg %p74
      %p154 = scmp.lt.s32.totalorder %s18, 1
      %s155 = scalar_select %p154, %s18, 1
      %p156 = scmp.lt.s32.totalorder %s19, 0
      %s157 = scalar_select %p156, %s19, 0
      %s158 = smul.addr %s155, 2
      %s159 = sadd.s32 %s157, %s158
      %s160 = smul.addr %s159, 8
      %s161 = scalar_lea.vmem %s1, %s160
      %p162 = pneg %p105
      %p163 = pneg %p102
      %p164 = scmp.lt.s32.totalorder %s18, 1
      %s165 = scalar_select %p164, %s18, 1
      %p166 = scmp.lt.s32.totalorder %s19, 0
      %s167 = scalar_select %p166, %s19, 0
      %s168 = smul.addr %s165, 2
      %s169 = sadd.s32 %s167, %s168
      %s170 = smul.addr %s169, 8
      %s171 = scalar_lea.vmem %s2, %s170
      %p172 = scmp.lt.s32.totalorder %s18, 1
      %s173 = scalar_select %p172, %s18, 1
      %p174 = scmp.lt.s32.totalorder %s19, 0
      %s175 = scalar_select %p174, %s19, 0
      %s176 = smul.addr %s173, 2
      %s177 = sadd.s32 %s175, %s176
      %s178 = smul.addr %s177, 8
      %s179 = scalar_lea.vmem %s0, %s178
      %p180 = scmp.lt.s32.totalorder %s18, 1
      %s181 = scalar_select %p180, %s18, 1
      %p182 = scmp.lt.s32.totalorder %s19, 0
      %s183 = scalar_select %p182, %s19, 0
      %s184 = smul.addr %s181, 2
      %s185 = sadd.s32 %s183, %s184
      %s186 = smul.addr %s185, 8
      %s187 = scalar_lea.vmem %s1, %s186
      %p188 = scmp.lt.s32.totalorder %s18, 1
      %s189 = scalar_select %p188, %s18, 1
      %p190 = scmp.lt.s32.totalorder %s19, 0
      %s191 = scalar_select %p190, %s19, 0
      %s192 = smul.addr %s189, 2
      %s193 = sadd.s32 %s191, %s192
      %s194 = smul.addr %s193, 8
      %s195 = scalar_lea.vmem %s2, %s194
      %v196 = vld [vmem:[%s179] sm:$0xff]
      %v197 = vld [vmem:[%s179 + $0x8] sm:$0xff]
      %vm198 = vcmask 64512
      %199 = vst.msk [vmem:[#allocation2 + $0x2] sm:$0xff] %vm198, %v196
      %200 = vst.msk [vmem:[#allocation2 + $0xa] sm:$0xff] %vm198, %v197
      %v201 = vlaneseq
      %v202 = vshrl.u32 %v201, 7
      %v203 = vsub.s32 0, %v202
      %v204 = vrot.slane %v196, %v203
      %vm205 = vcmask 58368
      %206 = vst.msk [vmem:[#allocation2] sm:$0x3] %vm205, %v204
      %v207 = vlaneseq
      %v208 = vshrl.u32 %v207, 7
      %v209 = vsub.s32 7, %v208
      %v210 = vrot.slane %v197, %v209
      %211 = vst.msk [vmem:[#allocation2 + $0x12] sm:$0x3] %vm205, %v210
      %v212 = vld [vmem:[#allocation2] sm:$0xff]
      %v213 = vld [vmem:[#allocation2 + $0x8] sm:$0xff]
      %v214 = vadd.f32 %v196, %v212
      %v215 = vadd.f32 %v197, %v213
      %v216 = vld [vmem:[#allocation2 + $0x1] sm:$0xff]
      %v217 = vld [vmem:[#allocation2 + $0x9] sm:$0xff]
      %v218 = vadd.f32 %v214, %v216
      %v219 = vadd.f32 %v215, %v217
      %v220 = vld [vmem:[#allocation2 + $0x3] sm:$0xff]
      %v221 = vld [vmem:[#allocation2 + $0xb] sm:$0xff]
      %v222 = vadd.f32 %v218, %v220
      %v223 = vadd.f32 %v219, %v221
      %v224 = vld [vmem:[#allocation2 + $0x4] sm:$0xff]
      %v225 = vld [vmem:[#allocation2 + $0xc] sm:$0xff]
      %v226 = vadd.f32 %v222, %v224
      %v227 = vadd.f32 %v223, %v225
      %v228 = vmul.f32 %v226, 0.2
      %v229 = vmul.f32 %v227, 0.2
      %230 = vst.msk [vmem:[%s195] sm:$0xff] %vm198, %v228
      %231 = vst.msk [vmem:[%s195 + $0x8] sm:$0xff] %vm198, %v229
      %v232 = vsub.f32 %v196, %v228
      %v233 = vsub.f32 %v197, %v229
      %234 = vst.msk [vmem:[%s187] sm:$0xff] %vm198, %v232
      %235 = vst.msk [vmem:[%s187 + $0x8] sm:$0xff] %vm198, %v233
      %p236 = scmp.lt.s32.totalorder %s18, 1
      %s237 = scalar_select %p236, %s18, 1
      %p238 = scmp.lt.s32.totalorder %s19, 0
      %s239 = scalar_select %p238, %s19, 0
      %s240 = smul.addr %s237, 2
      %s241 = sadd.s32 %s239, %s240
      %s242 = smul.addr %s241, 8
      %s243 = scalar_lea.vmem %s1, %s242
      %p244 = scmp.lt.s32.totalorder %s18, 1
      %s245 = scalar_select %p244, %s18, 1
      %p246 = scmp.lt.s32.totalorder %s19, 0
      %s247 = scalar_select %p246, %s19, 0
      %s248 = smul.addr %s245, 2
      %s249 = sadd.s32 %s247, %s248
      %s250 = smul.addr %s249, 8
      %s251 = scalar_lea.vmem %s2, %s250
      // Predicated region
      $region25: #{series_decomp.1} parent=23 // pred_check
        %p252 = pneg %p74
      $region26: #{series_decomp.1} parent=23 // pred_check_branch
        %254 = sbr.rel (%p252) target = $region28
      $region27: #{series_decomp.1} parent=23 // pred_region
        _
      $region28: #{series_decomp.1} parent=23 // pred_fallthru
        _
      // Predicated region
      $region29: #{series_decomp.1} parent=23 // pred_check
        %p255 = pneg %p102
      $region30: #{series_decomp.1} parent=23 // pred_check_branch
        %257 = sbr.rel (%p255) target = $region32
      $region31: #{series_decomp.1} parent=23 // pred_region
        _
      $region32: #{series_decomp.1} parent=23 // pred_fallthru
        _
    $region24: #{series_decomp.1} parent=5 // pred_fallthru
      _
    %p258 = scmp.le.s32.totalorder 2, %s9
    // Predicated region
    $region33: #{series_decomp.1} parent=5 // pred_check
      %p259 = pneg %p258
    $region34: #{series_decomp.1} parent=5 // pred_check_branch
      %261 = sbr.rel (%p259) target = $region36
    $region35: #{series_decomp.1} parent=5 // pred_region
      %s262 = ssub.s32 %s9, 2
      // Predicated region
      $region37: #{series_decomp.1} parent=35 // pred_check
        %p263 = pneg %p80
      $region38: #{series_decomp.1} parent=35 // pred_check_branch
        %265 = sbr.rel (%p263) target = $region40
      $region39: #{series_decomp.1} parent=35 // pred_region
        %p266 = scmp.lt.s32.totalorder %s20, 1
        %s267 = scalar_select %p266, %s20, 1
        %p268 = scmp.lt.s32.totalorder %s21, 0
        %s269 = scalar_select %p268, %s21, 0
        %s270 = smul.addr %s267, 2
        %s271 = sadd.s32 %s269, %s270
        %s272 = smul.addr %s271, 8
        %s273 = scalar_lea.vmem %s1, %s272
      $region40: #{series_decomp.1} parent=35 // pred_fallthru
        _
      // Predicated region
      $region41: #{series_decomp.1} parent=35 // pred_check
        %p274 = pneg %p108
      $region42: #{series_decomp.1} parent=35 // pred_check_branch
        %276 = sbr.rel (%p274) target = $region44
      $region43: #{series_decomp.1} parent=35 // pred_region
        %p277 = scmp.lt.s32.totalorder %s20, 1
        %s278 = scalar_select %p277, %s20, 1
        %p279 = scmp.lt.s32.totalorder %s21, 0
        %s280 = scalar_select %p279, %s21, 0
        %s281 = smul.addr %s278, 2
        %s282 = sadd.s32 %s280, %s281
        %s283 = smul.addr %s282, 8
        %s284 = scalar_lea.vmem %s2, %s283
      $region44: #{series_decomp.1} parent=35 // pred_fallthru
        _
    $region36: #{series_decomp.1} parent=5 // pred_fallthru
      _
  $region6: #{series_decomp.1} parent=0 // loop_footer
    %s13 = sadd.s32 1, %s9
  $region7: #{series_decomp.1} parent=0 // loop_footer_branch
    %8 = sbr.rel target = $region3
  $region8: #{series_decomp.1} parent=0 // loop_exit
    _

</llo_original>
